<compile_context>
chip_gen: v6e
topology: v6e:2x2x1
jax: 0.10.0
libtpu: 0.0.40
codegen_flags: <defaults>
</compile_context>

<pallas_src>
import jax
import jax.numpy as jnp
from jax.experimental import pallas as pl
from jax.experimental.pallas import tpu as pltpu


# ----------------------------------------------------------------------------
# Pallas kernel: one (batch, spatial-tile) block; spatial on the lane axis.
#   out = x * sigmoid(Wp_eff . relu(Wg_eff@g + Wx_eff@x + b_sum) + bp_eff)
# ----------------------------------------------------------------------------
def attn_block_kernel(g_ref, x_ref, wg_ref, wx_ref, aux_ref, o_ref):
    g_blk = g_ref[...]                      # (F_g, T)
    x_blk = x_ref[...]                      # (F_l, T)

    # Packed per-channel operands: col 0 = fused branch bias, col 1 = psi
    # weight, element [0, 2] = psi bias.
    b_sum = aux_ref[:, 0:1]                 # (F_int, 1)
    wp = aux_ref[:, 1:2]                    # (F_int, 1)
    bp = aux_ref[0:1, 2:3]                  # (1, 1)

    # Two 1x1 convs (+ folded BN) as channel-contraction matmuls, fused bias.
    g1 = jnp.dot(wg_ref[...], g_blk, preferred_element_type=jnp.float32)
    x1 = jnp.dot(wx_ref[...], x_blk, preferred_element_type=jnp.float32)
    h = jnp.maximum(g1 + x1 + b_sum, 0.0)                    # (F_int, T)

    # psi conv -> single output channel: VPU multiply + sublane reduction.
    p = jnp.sum(h * wp, axis=0, keepdims=True) + bp          # (1, T)
    psi = jax.nn.sigmoid(p)

    # Gate x; psi broadcasts over the channel sublanes.  Lane-dense store.
    o_ref[...] = (x_blk.astype(jnp.float32) * psi).astype(o_ref.dtype)


# ----------------------------------------------------------------------------
# Generation query (safe fallbacks: conservative 64 MiB VMEM, single TC).
# ----------------------------------------------------------------------------
def _tpu_generation_info():
    vmem_cap = 64 * 1024 * 1024
    two_tc = False
    try:
        vmem_cap = int(pltpu.get_tpu_info().vmem_capacity_bytes)
    except Exception:
        pass
    try:
        two_tc = "v7" in jax.devices()[0].device_kind.lower()
    except Exception:
        pass
    return vmem_cap, two_tc


# ----------------------------------------------------------------------------
# Wrapper: BN folding + layout plumbing (no pads, no transposes) + pallas_call
# ----------------------------------------------------------------------------
def attention_block_pallas(g_nchw, x_nchw, params, *, tile_s=None):
    N, F_g, H, W = g_nchw.shape
    N2, F_l, H2, W2 = x_nchw.shape
    assert (N, H, W) == (N2, H2, W2)
    F_int = params["wg"].shape[1]
    HW = H * W

    # Fold eval-mode BatchNorm into the 1x1 conv weights / biases.
    # TODO(synk): training-mode BatchNorm (batch statistics) is not modeled;
    # this matches nn.BatchNorm2d in eval() mode.
    def fold(w, b, gamma, beta, mean, var, eps=1e-5):
        scale = gamma / jnp.sqrt(var + eps)              # (Cout,)
        w_eff = w * scale[None, :]                       # (Cin, Cout)
        b_eff = (b - mean) * scale + beta                # (Cout,)
        return w_eff.astype(jnp.float32), b_eff.astype(jnp.float32)

    wg_eff, bg_eff = fold(params["wg"], params["bg"], params["bn_g_gamma"],
                          params["bn_g_beta"], params["bn_g_mean"],
                          params["bn_g_var"])
    wx_eff, bx_eff = fold(params["wx"], params["bx"], params["bn_x_gamma"],
                          params["bn_x_beta"], params["bn_x_mean"],
                          params["bn_x_var"])
    wp_eff, bp_eff = fold(params["wp"], params["bp"], params["bn_p_gamma"],
                          params["bn_p_beta"], params["bn_p_mean"],
                          params["bn_p_var"])

    # (Cin, Cout) -> (Cout, Cin): kernel contracts channels from the left.
    # bf16 inputs -> bf16 MXU operands (f32 accumulation); else keep f32.
    w_dtype = jnp.bfloat16 if g_nchw.dtype == jnp.bfloat16 else jnp.float32
    wg_t = jnp.transpose(wg_eff).astype(w_dtype)         # (F_int, F_g)
    wx_t = jnp.transpose(wx_eff).astype(w_dtype)         # (F_int, F_l)

    # Pack tiny per-channel operands into one small slab (one DMA).
    aux = jnp.zeros((F_int, 3), jnp.float32)
    aux = aux.at[:, 0].set(bg_eff + bx_eff)              # fused branch bias
    aux = aux.at[:, 1].set(wp_eff[:, 0])                 # psi weight
    aux = aux.at[0, 2].set(bp_eff[0])                    # psi bias

    # Keep NCHW; just flatten spatial (contiguous -> free reshape).
    g3d = g_nchw.reshape(N, F_g, HW)
    x3d = x_nchw.reshape(N, F_l, HW)

    # ---- generation-aware VMEM budgets ----
    vmem_cap, two_tc = _tpu_generation_info()
    if vmem_cap <= 64 * 1024 * 1024:          # v7x-class (64 MiB per TC)
        vmem_limit = 40 * 1024 * 1024
        tile_budget = 26 * 1024 * 1024
    else:                                     # v5e / v6e (128 MiB)
        vmem_limit = 100 * 1024 * 1024
        tile_budget = 56 * 1024 * 1024

    # ---- choose the spatial tile (lane axis, multiple of 128) ----
    if tile_s is None:
        in_b = jnp.dtype(g_nchw.dtype).itemsize
        out_b = jnp.dtype(x_nchw.dtype).itemsize
        w_b = jnp.dtype(w_dtype).itemsize
        # Per lane-column: double-buffered g/x inputs + output, plus the f32
        # intermediates g1/x1/h and the psi rows.
        per_col = (2 * (F_g + F_l) * in_b + 2 * F_l * out_b
                   + 3 * F_int * 4 + 16)
        # Fixed: weight/aux tiles (worst-case double-buffered) + slack.
        fixed = 2 * (F_int * (F_g + F_l) * w_b + F_int * 128 * 4) + (1 << 20)
        cap_cols = max(tile_budget - fixed, per_col * 128) // per_col
        cap_cols = max(128, (cap_cols // 128) * 128)
        tile_s = int(min(32768, cap_cols))

    if HW < 128:
        # Full-extent lane block (allowed: equals the full array dim).
        tile_s = HW
    else:
        hw_floor = (HW // 128) * 128          # never exceed the array extent
        tile_s = max(128, min((tile_s // 128) * 128, hw_floor))
        # v7x megacore only: split when batch alone can't feed both cores.
        if two_tc and N * pl.cdiv(HW, tile_s) < 2 and tile_s >= 256:
            tile_s = max(128, (tile_s // 2 // 128) * 128)

    grid = (N, pl.cdiv(HW, tile_s))           # ragged last tile is fine

    out3d = pl.pallas_call(
        attn_block_kernel,
        out_shape=jax.ShapeDtypeStruct((N, F_l, HW), x_nchw.dtype),
        grid_spec=pltpu.PrefetchScalarGridSpec(
            num_scalar_prefetch=0,
            grid=grid,
            in_specs=[
                pl.BlockSpec((None, F_g, tile_s), lambda n, s: (n, 0, s)),  # g
                pl.BlockSpec((None, F_l, tile_s), lambda n, s: (n, 0, s)),  # x
                pl.BlockSpec((F_int, F_g), lambda n, s: (0, 0)),   # Wg^T
                pl.BlockSpec((F_int, F_l), lambda n, s: (0, 0)),   # Wx^T
                pl.BlockSpec((F_int, 3), lambda n, s: (0, 0)),     # aux slab
            ],
            out_specs=pl.BlockSpec((None, F_l, tile_s), lambda n, s: (n, 0, s)),
        ),
        compiler_params=pltpu.CompilerParams(
            dimension_semantics=("parallel", "parallel"),
            vmem_limit_bytes=vmem_limit),
    )(g3d, x3d, wg_t, wx_t, aux)

    return out3d.reshape(N, F_l, H, W)


# ----------------------------------------------------------------------------
# Pure-JAX reference for correctness check.
# ----------------------------------------------------------------------------
def attention_block_ref(g_nchw, x_nchw, params, eps=1e-5):
    def conv1x1_bn(y_nchw, w, b, gamma, beta, mean, var):
        # y: (N, Cin, H, W), w: (Cin, Cout)
        y = jnp.einsum("nchw,cd->ndhw", y_nchw, w) + b[None, :, None, None]
        scale = gamma / jnp.sqrt(var + eps)
        return (y - mean[None, :, None, None]) * scale[None, :, None, None] \
               + beta[None, :, None, None]

    g1 = conv1x1_bn(g_nchw, params["wg"], params["bg"], params["bn_g_gamma"],
                    params["bn_g_beta"], params["bn_g_mean"], params["bn_g_var"])
    x1 = conv1x1_bn(x_nchw, params["wx"], params["bx"], params["bn_x_gamma"],
                    params["bn_x_beta"], params["bn_x_mean"], params["bn_x_var"])
    h = jnp.maximum(g1 + x1, 0.0)
    p = conv1x1_bn(h, params["wp"], params["bp"], params["bn_p_gamma"],
                   params["bn_p_beta"], params["bn_p_mean"], params["bn_p_var"])
    psi = jax.nn.sigmoid(p)
    return x_nchw * psi


def init_params(key, F_g, F_l, F_int):
    ks = jax.random.split(key, 12)
    return {
        # conv weights stored as (Cin, Cout)
        "wg": jax.random.normal(ks[0], (F_g, F_int), jnp.float32) * 0.1,
        "bg": jax.random.normal(ks[1], (F_int,), jnp.float32) * 0.1,
        "wx": jax.random.normal(ks[2], (F_l, F_int), jnp.float32) * 0.1,
        "bx": jax.random.normal(ks[3], (F_int,), jnp.float32) * 0.1,
        "wp": jax.random.normal(ks[4], (F_int, 1), jnp.float32) * 0.1,
        "bp": jax.random.normal(ks[5], (1,), jnp.float32) * 0.1,
        # eval-mode BatchNorm running stats (non-trivial, to exercise folding)
        "bn_g_gamma": 1.0 + 0.1 * jax.random.normal(ks[6], (F_int,), jnp.float32),
        "bn_g_beta": 0.1 * jax.random.normal(ks[7], (F_int,), jnp.float32),
        "bn_g_mean": 0.1 * jax.random.normal(ks[8], (F_int,), jnp.float32),
        "bn_g_var": jnp.abs(jax.random.normal(ks[9], (F_int,), jnp.float32)) + 0.5,
        "bn_x_gamma": 1.0 + 0.1 * jax.random.normal(ks[10], (F_int,), jnp.float32),
        "bn_x_beta": jnp.zeros((F_int,), jnp.float32),
        "bn_x_mean": jnp.zeros((F_int,), jnp.float32),
        "bn_x_var": jnp.ones((F_int,), jnp.float32),
        "bn_p_gamma": jnp.ones((1,), jnp.float32),
        "bn_p_beta": jnp.zeros((1,), jnp.float32),
        "bn_p_mean": jnp.zeros((1,), jnp.float32),
        "bn_p_var": jnp.ones((1,), jnp.float32),
    }


if __name__ == "__main__":
    key = jax.random.PRNGKey(0)
    k_g, k_x, k_p = jax.random.split(key, 3)

    N, F_g, F_l, F_int, H, W = 2, 4, 4, 8, 16, 16
    g = jax.random.normal(k_g, (N, F_g, H, W), jnp.float32)
    x = jax.random.normal(k_x, (N, F_l, H, W), jnp.float32)
    params = init_params(k_p, F_g, F_l, F_int)

    out = attention_block_pallas(g, x, params)
    out = jax.block_until_ready(out)

    ref = attention_block_ref(g, x, params)
    assert out.shape == x.shape, (out.shape, x.shape)
    assert jnp.allclose(out, ref, atol=2e-5, rtol=2e-5), \
        float(jnp.max(jnp.abs(out - ref)))

    print("KERNEL_OK")
</pallas_src>

<mosaic_0001>
module attributes {stable_mosaic.version = 11 : i64} {
  func.func @attn_block_kernel(%arg0: i32, %arg1: i32, %arg2: memref<1x4x256xf32, #tpu.memory_space<vmem>>, %arg3: memref<1x4x256xf32, #tpu.memory_space<vmem>>, %arg4: memref<8x4xf32, #tpu.memory_space<vmem>>, %arg5: memref<8x4xf32, #tpu.memory_space<vmem>>, %arg6: memref<8x3xf32, #tpu.memory_space<vmem>>, %arg7: memref<1x4x256xf32, #tpu.memory_space<vmem>>) attributes {dimension_semantics = [#tpu.dimension_semantics<parallel>, #tpu.dimension_semantics<parallel>], iteration_bounds = array<i64: 2, 1>, scalar_prefetch = 0 : i64, scratch_operands = 0 : i64, tpu.core_type = #tpu.core_type<tc>, window_params = [{transform_indices = @transform_0, window_bounds = array<i64: 1, 4, 256>}, {transform_indices = @transform_1, window_bounds = array<i64: 1, 4, 256>}, {pipeline_mode = #tpu.pipeline_mode<synchronous>, transform_indices = @transform_2, window_bounds = array<i64: 8, 4>}, {pipeline_mode = #tpu.pipeline_mode<synchronous>, transform_indices = @transform_3, window_bounds = array<i64: 8, 4>}, {pipeline_mode = #tpu.pipeline_mode<synchronous>, transform_indices = @transform_4, window_bounds = array<i64: 8, 3>}, {transform_indices = @transform_5, window_bounds = array<i64: 1, 4, 256>}]} {
    %c0 = arith.constant 0 : index
    %c0_0 = arith.constant 0 : index
    %c0_1 = arith.constant 0 : index
    %0 = vector.load %arg2[%c0, %c0_0, %c0_1] : memref<1x4x256xf32, #tpu.memory_space<vmem>>, vector<1x4x256xf32>
    %1 = vector.shape_cast %0 : vector<1x4x256xf32> to vector<4x256xf32>
    %c0_2 = arith.constant 0 : index
    %c0_3 = arith.constant 0 : index
    %c0_4 = arith.constant 0 : index
    %2 = vector.load %arg3[%c0_2, %c0_3, %c0_4] : memref<1x4x256xf32, #tpu.memory_space<vmem>>, vector<1x4x256xf32>
    %3 = vector.shape_cast %2 : vector<1x4x256xf32> to vector<4x256xf32>
    %c0_5 = arith.constant 0 : index
    %c0_6 = arith.constant 0 : index
    %4 = vector.load %arg6[%c0_5, %c0_6] : memref<8x3xf32, #tpu.memory_space<vmem>>, vector<8x1xf32>
    %c0_7 = arith.constant 0 : index
    %c1 = arith.constant 1 : index
    %5 = vector.load %arg6[%c0_7, %c1] : memref<8x3xf32, #tpu.memory_space<vmem>>, vector<8x1xf32>
    %c0_8 = arith.constant 0 : index
    %c2 = arith.constant 2 : index
    %6 = vector.load %arg6[%c0_8, %c2] : memref<8x3xf32, #tpu.memory_space<vmem>>, vector<1x1xf32>
    %c0_9 = arith.constant 0 : index
    %c0_10 = arith.constant 0 : index
    %7 = vector.load %arg4[%c0_9, %c0_10] : memref<8x4xf32, #tpu.memory_space<vmem>>, vector<8x4xf32>
    %cst = arith.constant dense<0.000000e+00> : vector<8x256xf32>
    %8 = tpu.matmul %7, %1, %cst {dimension_numbers = #tpu.dot_dimension_numbers<[1], [0], [0], [1], [0, 0, 1, 1], [], []>} : vector<8x4xf32>, vector<4x256xf32>, vector<8x256xf32> -> vector<8x256xf32>
    %c0_11 = arith.constant 0 : index
    %c0_12 = arith.constant 0 : index
    %9 = vector.load %arg5[%c0_11, %c0_12] : memref<8x4xf32, #tpu.memory_space<vmem>>, vector<8x4xf32>
    %cst_13 = arith.constant dense<0.000000e+00> : vector<8x256xf32>
    %10 = tpu.matmul %9, %3, %cst_13 {dimension_numbers = #tpu.dot_dimension_numbers<[1], [0], [0], [1], [0, 0, 1, 1], [], []>} : vector<8x4xf32>, vector<4x256xf32>, vector<8x256xf32> -> vector<8x256xf32>
    %11 = arith.addf %8, %10 : vector<8x256xf32>
    %12 = vector.broadcast %4 : vector<8x1xf32> to vector<8x256xf32>
    %13 = arith.addf %11, %12 : vector<8x256xf32>
    %cst_14 = arith.constant 0.000000e+00 : f32
    %14 = vector.broadcast %cst_14 : f32 to vector<8x256xf32>
    %15 = arith.maximumf %13, %14 : vector<8x256xf32>
    %16 = vector.broadcast %5 : vector<8x1xf32> to vector<8x256xf32>
    %17 = arith.mulf %15, %16 : vector<8x256xf32>
    %cst_15 = arith.constant dense<0.000000e+00> : vector<256xf32>
    %18 = vector.multi_reduction <add>, %17, %cst_15 [0] : vector<8x256xf32> to vector<256xf32>
    %19 = vector.shape_cast %18 : vector<256xf32> to vector<1x256xf32>
    %20 = vector.broadcast %6 : vector<1x1xf32> to vector<1x256xf32>
    %21 = arith.addf %19, %20 : vector<1x256xf32>
    %22 = arith.negf %21 : vector<1x256xf32>
    %23 = math.exp %22 : vector<1x256xf32>
    %cst_16 = arith.constant 1.000000e+00 : f32
    %24 = vector.broadcast %cst_16 : f32 to vector<1x256xf32>
    %25 = arith.addf %24, %23 : vector<1x256xf32>
    %26 = arith.divf %24, %25 : vector<1x256xf32>
    %27 = vector.broadcast %26 : vector<1x256xf32> to vector<4x256xf32>
    %28 = arith.mulf %3, %27 : vector<4x256xf32>
    %c0_17 = arith.constant 0 : index
    %c0_18 = arith.constant 0 : index
    %c0_19 = arith.constant 0 : index
    %29 = vector.load %arg7[%c0_17, %c0_18, %c0_19] : memref<1x4x256xf32, #tpu.memory_space<vmem>>, vector<1x4x256xf32>
    %30 = vector.shape_cast %29 : vector<1x4x256xf32> to vector<4x256xf32>
    %31 = vector.shape_cast %28 : vector<4x256xf32> to vector<1x4x256xf32>
    tpu.vector_store %arg7[%c0_17, %c0_18, %c0_19], %31 {strides = array<i32>} : memref<1x4x256xf32, #tpu.memory_space<vmem>>, vector<1x4x256xf32>,
    return
  }
  func.func @transform_0(%arg0: i32, %arg1: i32) -> (i32, i32, i32) {
    %c0_i32 = arith.constant 0 : i32
    %c0_i32_0 = arith.constant 0 : i32
    return %arg0, %c0_i32, %arg1 : i32, i32, i32
  }
  func.func @transform_1(%arg0: i32, %arg1: i32) -> (i32, i32, i32) {
    %c0_i32 = arith.constant 0 : i32
    %c0_i32_0 = arith.constant 0 : i32
    return %arg0, %c0_i32, %arg1 : i32, i32, i32
  }
  func.func @transform_2(%arg0: i32, %arg1: i32) -> (i32, i32) {
    %c0_i32 = arith.constant 0 : i32
    %c0_i32_0 = arith.constant 0 : i32
    %c0_i32_1 = arith.constant 0 : i32
    return %c0_i32, %c0_i32_0 : i32, i32
  }
  func.func @transform_3(%arg0: i32, %arg1: i32) -> (i32, i32) {
    %c0_i32 = arith.constant 0 : i32
    %c0_i32_0 = arith.constant 0 : i32
    %c0_i32_1 = arith.constant 0 : i32
    return %c0_i32, %c0_i32_0 : i32, i32
  }
  func.func @transform_4(%arg0: i32, %arg1: i32) -> (i32, i32) {
    %c0_i32 = arith.constant 0 : i32
    %c0_i32_0 = arith.constant 0 : i32
    %c0_i32_1 = arith.constant 0 : i32
    return %c0_i32, %c0_i32_0 : i32, i32
  }
  func.func @transform_5(%arg0: i32, %arg1: i32) -> (i32, i32, i32) {
    %c0_i32 = arith.constant 0 : i32
    %c0_i32_0 = arith.constant 0 : i32
    return %arg0, %c0_i32, %arg1 : i32, i32, i32
  }
}

</mosaic_0001>

<llo_original>
// kernel: tpu_custom_call.1
$region0: #{tpu_custom_call.1}
  #allocation0 [shape = 'u32[]', space=smem, size = 0x4, offset = 0x4, fixed_abs, tag = 'smem constant byte address 0x4 - core index']
  #allocation1 [shape = 'u32[144,128]{1,0:T(1,128)}', space=vmem, size = 0x12000, scoped, tag = 'internal scratch']
  %s0 = inlined_call_operand.vmem [shape: f32[2,4,256], index: 0, kind: input, shape index: {}]
  %s1 = inlined_call_operand.vmem [shape: f32[2,4,256], index: 1, kind: input, shape index: {}]
  %s2 = inlined_call_operand.vmem [shape: f32[8,4], index: 2, kind: input, shape index: {}]
  %s3 = inlined_call_operand.vmem [shape: f32[8,4], index: 3, kind: input, shape index: {}]
  %s4 = inlined_call_operand.vmem [shape: f32[8,3], index: 4, kind: input, shape index: {}]
  %s5 = inlined_call_operand.hbm [shape: f32[2,4,256], index: 5, kind: output, shape index: {}]
  %s6 = sld [smem:[#allocation0]]
  $region53: #{tpu_custom_call.1} parent=0
    _
  %s8 = ssub.s32 1, %s6
  %s9 = scalar_select 0, %s8, %s6
  $region1: #{tpu_custom_call.1} parent=0
    #allocation2 [shape = 'u8[8192]{0}', space=vmem, size = 0x2000, scoped, tag = 'output window, operand 0']
    #allocation3 [shape = 's32[2]{0}', space=sflag, size = 0x8, scoped, tag = 'scoped memory for tpu_custom_call.1']
    %10 = vsyncpa [#allocation3], 0
    %s11 = scalar_lea.sflag [#allocation3], 1
    %12 = vsyncpa %s11, 0
    loop: start=0, step=1, limit=4
    $region2: #{tpu_custom_call.1} parent=1 // loop_pre_header
      _
    $region3: #{tpu_custom_call.1} parent=1 // loop_header
      %s14 = sphi 0, %s18
      %p15 = scmp.ge.s32.totalorder %s14, 4
      %s21 = sphi 0, %s33
      %s22 = sphi 0, %s29
      %s23 = sphi 0, %s21
      %s24 = sphi 0, %s22
      %s25 = sphi 0, %s23
      %s26 = sphi 0, %s24
      %s38 = sphi 0, %s40
      %s41 = sphi 0, %s38
      %s42 = sphi 0, %s41
      %s58 = sphi 0, %s42
      %s66 = sphi 0, %s68
      %s69 = sphi 0, %s66
      %s70 = sphi 0, %s69
      %s86 = sphi 0, %s70
      %s90 = sphi 0, %s90
      %s92 = sphi 0, %s90
      %s93 = sphi 0, %s92
      %s107 = sphi 0, %s93
      %s111 = sphi 0, %s111
      %s113 = sphi 0, %s111
      %s114 = sphi 0, %s113
      %s128 = sphi 0, %s114
      %s132 = sphi 0, %s132
      %s134 = sphi 0, %s132
      %s135 = sphi 0, %s134
      %s149 = sphi 0, %s135
      %s157 = sphi 0, %s159
      %s160 = sphi 0, %s157
      %s161 = sphi 0, %s160
      %s177 = sphi 0, %s161
    $region4: #{tpu_custom_call.1} parent=1 // loop_header_branch
      %17 = sbr.rel (%p15) target = $region8
    $region5: #{tpu_custom_call.1} parent=1 // loop_body
      %s19 = ssub.s32 %s14, 1
      %s20 = ssub.s32 %s14, 2
      %s27 = sadd.s32 1, %s22
      %p28 = scmp.ge.s32.totalorder %s27, 1
      %s29 = scalar_select %p28, 0, %s27
      %s30 = sadd.s32 1, %s21
      %s31 = scalar_select %p28, %s30, %s21
      %p32 = scmp.ge.s32.totalorder %s31, 2
      %s33 = scalar_select %p32, 0, %s31
      %s34 = ssub.s32 %s21, %s33
      %s35 = ssub.s32 %s22, %s29
      %s36 = sor.u32 %s34, %s35
      %p37 = scmp.eq.s32.totalorder %s36, 0
      %s39 = sadd.s32 %s38, 1
      %s40 = scalar_select %p37, %s38, %s39
      %p43 = pneg %p37
      %p44 = scmp.eq.s32.totalorder %s14, 1
      %p45 = por %p43, %p44
      %p46 = scmp.ne.s32.totalorder %s38, %s41
      %p47 = scmp.eq.s32.totalorder %s14, 0
      %p48 = por %p46, %p47
      %p49 = scmp.ne.s32.totalorder %s38, %s41
      %p50 = scmp.eq.s32.totalorder %s19, 1
      %p51 = por %p49, %p50
      %p52 = scmp.ne.s32.totalorder %s41, %s42
      %p53 = scmp.eq.s32.totalorder %s19, 0
      %p54 = por %p52, %p53
      %p55 = scmp.ne.s32.totalorder %s41, %s42
      %p56 = scmp.eq.s32.totalorder %s20, 1
      %p57 = por %p55, %p56
      %p59 = scmp.ne.s32.totalorder %s42, %s58
      %p60 = scmp.eq.s32.totalorder %s20, 0
      %p61 = por %p59, %p60
      %s62 = ssub.s32 %s21, %s33
      %s63 = ssub.s32 %s22, %s29
      %s64 = sor.u32 %s62, %s63
      %p65 = scmp.eq.s32.totalorder %s64, 0
      %s67 = sadd.s32 %s66, 1
      %s68 = scalar_select %p65, %s66, %s67
      %p71 = pneg %p65
      %p72 = scmp.eq.s32.totalorder %s14, 1
      %p73 = por %p71, %p72
      %p74 = scmp.ne.s32.totalorder %s66, %s69
      %p75 = scmp.eq.s32.totalorder %s14, 0
      %p76 = por %p74, %p75
      %p77 = scmp.ne.s32.totalorder %s66, %s69
      %p78 = scmp.eq.s32.totalorder %s19, 1
      %p79 = por %p77, %p78
      %p80 = scmp.ne.s32.totalorder %s69, %s70
      %p81 = scmp.eq.s32.totalorder %s19, 0
      %p82 = por %p80, %p81
      %p83 = scmp.ne.s32.totalorder %s69, %s70
      %p84 = scmp.eq.s32.totalorder %s20, 1
      %p85 = por %p83, %p84
      %p87 = scmp.ne.s32.totalorder %s70, %s86
      %p88 = scmp.eq.s32.totalorder %s20, 0
      %p89 = por %p87, %p88
      %s91 = sadd.s32 %s90, 1
      %p94 = scmp.eq.s32.totalorder %s14, 1
      %p95 = scmp.ne.s32.totalorder %s90, %s92
      %p96 = scmp.eq.s32.totalorder %s14, 0
      %p97 = por %p95, %p96
      %p98 = scmp.ne.s32.totalorder %s90, %s92
      %p99 = scmp.eq.s32.totalorder %s19, 1
      %p100 = por %p98, %p99
      %p101 = scmp.ne.s32.totalorder %s92, %s93
      %p102 = scmp.eq.s32.totalorder %s19, 0
      %p103 = por %p101, %p102
      %p104 = scmp.ne.s32.totalorder %s92, %s93
      %p105 = scmp.eq.s32.totalorder %s20, 1
      %p106 = por %p104, %p105
      %p108 = scmp.ne.s32.totalorder %s93, %s107
      %p109 = scmp.eq.s32.totalorder %s20, 0
      %p110 = por %p108, %p109
      %s112 = sadd.s32 %s111, 1
      %p115 = scmp.eq.s32.totalorder %s14, 1
      %p116 = scmp.ne.s32.totalorder %s111, %s113
      %p117 = scmp.eq.s32.totalorder %s14, 0
      %p118 = por %p116, %p117
      %p119 = scmp.ne.s32.totalorder %s111, %s113
      %p120 = scmp.eq.s32.totalorder %s19, 1
      %p121 = por %p119, %p120
      %p122 = scmp.ne.s32.totalorder %s113, %s114
      %p123 = scmp.eq.s32.totalorder %s19, 0
      %p124 = por %p122, %p123
      %p125 = scmp.ne.s32.totalorder %s113, %s114
      %p126 = scmp.eq.s32.totalorder %s20, 1
      %p127 = por %p125, %p126
      %p129 = scmp.ne.s32.totalorder %s114, %s128
      %p130 = scmp.eq.s32.totalorder %s20, 0
      %p131 = por %p129, %p130
      %s133 = sadd.s32 %s132, 1
      %p136 = scmp.eq.s32.totalorder %s14, 1
      %p137 = scmp.ne.s32.totalorder %s132, %s134
      %p138 = scmp.eq.s32.totalorder %s14, 0
      %p139 = por %p137, %p138
      %p140 = scmp.ne.s32.totalorder %s132, %s134
      %p141 = scmp.eq.s32.totalorder %s19, 1
      %p142 = por %p140, %p141
      %p143 = scmp.ne.s32.totalorder %s134, %s135
      %p144 = scmp.eq.s32.totalorder %s19, 0
      %p145 = por %p143, %p144
      %p146 = scmp.ne.s32.totalorder %s134, %s135
      %p147 = scmp.eq.s32.totalorder %s20, 1
      %p148 = por %p146, %p147
      %p150 = scmp.ne.s32.totalorder %s135, %s149
      %p151 = scmp.eq.s32.totalorder %s20, 0
      %p152 = por %p150, %p151
      %s153 = ssub.s32 %s21, %s33
      %s154 = ssub.s32 %s22, %s29
      %s155 = sor.u32 %s153, %s154
      %p156 = scmp.eq.s32.totalorder %s155, 0
      %s158 = sadd.s32 %s157, 1
      %s159 = scalar_select %p156, %s157, %s158
      %p162 = pneg %p156
      %p163 = scmp.eq.s32.totalorder %s14, 1
      %p164 = por %p162, %p163
      %p165 = scmp.ne.s32.totalorder %s157, %s160
      %p166 = scmp.eq.s32.totalorder %s14, 0
      %p167 = por %p165, %p166
      %p168 = scmp.ne.s32.totalorder %s157, %s160
      %p169 = scmp.eq.s32.totalorder %s19, 1
      %p170 = por %p168, %p169
      %p171 = scmp.ne.s32.totalorder %s160, %s161
      %p172 = scmp.eq.s32.totalorder %s19, 0
      %p173 = por %p171, %p172
      %p174 = scmp.ne.s32.totalorder %s160, %s161
      %p175 = scmp.eq.s32.totalorder %s20, 1
      %p176 = por %p174, %p175
      %p178 = scmp.ne.s32.totalorder %s161, %s177
      %p179 = scmp.eq.s32.totalorder %s20, 0
      %p180 = por %p178, %p179
      %p181 = scmp.le.s32.totalorder 1, %s14
      %p182 = scmp.lt.s32.totalorder %s14, 3
      %p183 = pnand %p181, %p182
      %p184 = pneg %p183
      // Predicated region
      $region9: #{tpu_custom_call.1} parent=5 // pred_check
        _
      $region10: #{tpu_custom_call.1} parent=5 // pred_check_branch
        %186 = sbr.rel (%p183) target = $region12
      $region11: #{tpu_custom_call.1} parent=5 // pred_region
        %s187 = ssub.s32 %s14, 1
        // Predicated region
        $region13: #{tpu_custom_call.1} parent=11 // pred_check
          %p188 = pneg %p103
        $region14: #{tpu_custom_call.1} parent=11 // pred_check_branch
          %190 = sbr.rel (%p188) target = $region16
        $region15: #{tpu_custom_call.1} parent=11 // pred_region
          _
        $region16: #{tpu_custom_call.1} parent=11 // pred_fallthru
          _
        // Predicated region
        $region17: #{tpu_custom_call.1} parent=11 // pred_check
          %p191 = pneg %p124
        $region18: #{tpu_custom_call.1} parent=11 // pred_check_branch
          %193 = sbr.rel (%p191) target = $region20
        $region19: #{tpu_custom_call.1} parent=11 // pred_region
          _
        $region20: #{tpu_custom_call.1} parent=11 // pred_fallthru
          _
        // Predicated region
        $region21: #{tpu_custom_call.1} parent=11 // pred_check
          %p194 = pneg %p145
        $region22: #{tpu_custom_call.1} parent=11 // pred_check_branch
          %196 = sbr.rel (%p194) target = $region24
        $region23: #{tpu_custom_call.1} parent=11 // pred_region
          _
        $region24: #{tpu_custom_call.1} parent=11 // pred_fallthru
          _
      $region12: #{tpu_custom_call.1} parent=5 // pred_fallthru
        _
      %p197 = scmp.lt.s32.totalorder %s14, 2
      // Predicated region
      $region25: #{tpu_custom_call.1} parent=5 // pred_check
        %p198 = pneg %p197
      $region26: #{tpu_custom_call.1} parent=5 // pred_check_branch
        %200 = sbr.rel (%p198) target = $region28
      $region27: #{tpu_custom_call.1} parent=5 // pred_region
        // Predicated region
        $region29: #{tpu_custom_call.1} parent=27 // pred_check
          %p201 = pneg %p48
        $region30: #{tpu_custom_call.1} parent=27 // pred_check_branch
          %203 = sbr.rel (%p201) target = $region32
        $region31: #{tpu_custom_call.1} parent=27 // pred_region
          %s204 = smul.u32 2, %s22
          %p205 = scmp.lt.s32.totalorder %s21, 1
          %s206 = scalar_select %p205, %s21, 1
          %p207 = scmp.lt.s32.totalorder %s204, 1
          %s208 = scalar_select %p207, %s204, 1
          %s209 = smul.addr %s206, 2
          %s210 = sadd.s32 %s208, %s209
          %s211 = smul.addr %s210, 4
          %s212 = scalar_lea.vmem %s0, %s211
          %s213 = smul.u32 2, %s22
        $region32: #{tpu_custom_call.1} parent=27 // pred_fallthru
          _
        // Predicated region
        $region33: #{tpu_custom_call.1} parent=27 // pred_check
          %p214 = pneg %p76
        $region34: #{tpu_custom_call.1} parent=27 // pred_check_branch
          %216 = sbr.rel (%p214) target = $region36
        $region35: #{tpu_custom_call.1} parent=27 // pred_region
          %s217 = smul.u32 2, %s22
          %p218 = scmp.lt.s32.totalorder %s21, 1
          %s219 = scalar_select %p218, %s21, 1
          %p220 = scmp.lt.s32.totalorder %s217, 1
          %s221 = scalar_select %p220, %s217, 1
          %s222 = smul.addr %s219, 2
          %s223 = sadd.s32 %s221, %s222
          %s224 = smul.addr %s223, 4
          %s225 = scalar_lea.vmem %s1, %s224
          %s226 = smul.u32 2, %s22
        $region36: #{tpu_custom_call.1} parent=27 // pred_fallthru
          _
      $region28: #{tpu_custom_call.1} parent=5 // pred_fallthru
        _
      %p227 = scmp.le.s32.totalorder 1, %s14
      %p228 = scmp.lt.s32.totalorder %s14, 3
      %p229 = pnand %p227, %p228
      %p230 = pneg %p229
      // Predicated region
      $region37: #{tpu_custom_call.1} parent=5 // pred_check
        _
      $region38: #{tpu_custom_call.1} parent=5 // pred_check_branch
        %232 = sbr.rel (%p229) target = $region40
      $region39: #{tpu_custom_call.1} parent=5 // pred_region
        %s233 = ssub.s32 %s14, 1
        %s234 = smul.u32 2, %s24
        %p235 = scmp.lt.s32.totalorder %s23, 1
        %s236 = scalar_select %p235, %s23, 1
        %p237 = scmp.lt.s32.totalorder %s234, 1
        %s238 = scalar_select %p237, %s234, 1
        %s239 = smul.addr %s236, 2
        %s240 = sadd.s32 %s238, %s239
        %s241 = smul.addr %s240, 4
        %s242 = scalar_lea.vmem %s0, %s241
        %p243 = pneg %p54
        %p244 = pneg %p51
        %s245 = smul.u32 2, %s24
        %p246 = scmp.lt.s32.totalorder %s23, 1
        %s247 = scalar_select %p246, %s23, 1
        %p248 = scmp.lt.s32.totalorder %s245, 1
        %s249 = scalar_select %p248, %s245, 1
        %s250 = smul.addr %s247, 2
        %s251 = sadd.s32 %s249, %s250
        %s252 = smul.addr %s251, 4
        %s253 = scalar_lea.vmem %s1, %s252
        %p254 = pneg %p82
        %p255 = pneg %p79
        %p256 = pneg %p103
        %p257 = pneg %p100
        %p258 = pneg %p124
        %p259 = pneg %p121
        %p260 = pneg %p145
        %p261 = pneg %p142
        %p262 = pneg %p173
        %p263 = pneg %p170
        %s264 = sand.u32 %s160, 1
        %s265 = scalar_lea.sflag [#allocation3], %s264
        %s266 = sand.u32 %s160, 1
        %s267 = smul.addr %s266, 8
        %s268 = scalar_lea.vmem [#allocation2], %s267
        %s269 = smul.u32 2, %s24
        %p270 = scmp.lt.s32.totalorder %s23, 1
        %s271 = scalar_select %p270, %s23, 1
        %p272 = scmp.lt.s32.totalorder %s269, 1
        %s273 = scalar_select %p272, %s269, 1
        %s274 = smul.addr %s271, 2
        %s275 = sadd.s32 %s273, %s274
        %s276 = smul.addr %s275, 4
        %s277 = scalar_lea.vmem %s0, %s276
        %s278 = smul.u32 2, %s24
        %s279 = smul.u32 2, %s24
        %p280 = scmp.lt.s32.totalorder %s23, 1
        %s281 = scalar_select %p280, %s23, 1
        %p282 = scmp.lt.s32.totalorder %s279, 1
        %s283 = scalar_select %p282, %s279, 1
        %s284 = smul.addr %s281, 2
        %s285 = sadd.s32 %s283, %s284
        %s286 = smul.addr %s285, 4
        %s287 = scalar_lea.vmem %s1, %s286
        %s288 = smul.u32 2, %s24
        %s289 = smul.u32 2, %s24
        %v290 = vld [vmem:[%s277] sm:$0xff]
        %v291 = vld [vmem:[%s287] sm:$0xff]
        %v292 = vld [vmem:[%s4] sm:$0xff]
        %v293 = vld [vmem:[%s4] sm:$0x1]
        %v294 = vld [vmem:[%s2] sm:$0xff]
        %v295 = vld [vmem:[%s3] sm:$0xff]
        %v297 = vcombine.high %v291, %v291
        %vm298 = vcmask 31744
        %v300 = vsel %vm298, %v295, 0
        %vm302 = vcmask 1043456
        %v303 = vsel %vm302, %v291, 0
        %v305 = vsel %vm302, %v297, 0
        %307 = vmatprep.subr.mxu0 0.0
        %308 = vmatpush1.msra.mxu0 0.0
        %309 = vmatprep.subr.mxu0 0.0
        %310 = vmatpush1.msra.mxu0 0.0
        %311 = vmatprep.subr.mxu0 0.0
        %312 = vmatpush1.msra.mxu0 0.0
        %313 = vmatprep.subr.mxu0 0.0
        %314 = vmatpush1.msra.mxu0 0.0
        %315 = vmatprep.subr.mxu0 0.0
        %316 = vmatpush1.msra.mxu0 0.0
        %317 = vmatprep.subr.mxu0 0.0
        %318 = vmatpush1.msra.mxu0 0.0
        %319 = vmatprep.subr.mxu0 0.0
        %320 = vmatpush1.msra.mxu0 0.0
        %321 = vmatprep.subr.mxu0 0.0
        %322 = vmatpush1.msra.mxu0 0.0
        %323 = vmatprep.subr.mxu0 0.0
        %324 = vmatpush1.msra.mxu0 0.0
        %325 = vmatprep.subr.mxu0 0.0
        %326 = vmatpush1.msra.mxu0 0.0
        %327 = vmatprep.subr.mxu0 0.0
        %328 = vmatpush1.msra.mxu0 0.0
        %329 = vmatprep.subr.mxu0 0.0
        %330 = vmatpush1.msra.mxu0 0.0
        %331 = vmatprep.subr.mxu0 0.0
        %332 = vmatpush1.msra.mxu0 0.0
        %333 = vmatprep.subr.mxu0 0.0
        %334 = vmatpush1.msra.mxu0 0.0
        %335 = vmatprep.subr.mxu0 0.0
        %336 = vmatpush1.msra.mxu0 0.0
        %337 = vmatprep.subr.mxu0 %v305
        %338 = vmatpush1.msra.mxu0 %v303
        %339 = vmatprep.subr.mxu0 0.0
        %340 = vmatpush2.msra.mxu0 0.0
        %341 = vmatprep.subr.mxu0 0.0
        %342 = vmatpush2.msra.mxu0 0.0
        %343 = vmatprep.subr.mxu0 0.0
        %344 = vmatpush2.msra.mxu0 0.0
        %345 = vmatprep.subr.mxu0 0.0
        %346 = vmatpush2.msra.mxu0 0.0
        %347 = vmatprep.subr.mxu0 0.0
        %348 = vmatpush2.msra.mxu0 0.0
        %349 = vmatprep.subr.mxu0 0.0
        %350 = vmatpush2.msra.mxu0 0.0
        %351 = vmatprep.subr.mxu0 0.0
        %352 = vmatpush2.msra.mxu0 0.0
        %353 = vmatprep.subr.mxu0 0.0
        %354 = vmatpush2.msra.mxu0 0.0
        %355 = vmatprep.subr.mxu0 0.0
        %356 = vmatpush2.msra.mxu0 0.0
        %357 = vmatprep.subr.mxu0 0.0
        %358 = vmatpush2.msra.mxu0 0.0
        %359 = vmatprep.subr.mxu0 0.0
        %360 = vmatpush2.msra.mxu0 0.0
        %361 = vmatprep.subr.mxu0 0.0
        %362 = vmatpush2.msra.mxu0 0.0
        %363 = vmatprep.subr.mxu0 0.0
        %364 = vmatpush2.msra.mxu0 0.0
        %365 = vmatprep.subr.mxu0 0.0
        %366 = vmatpush2.msra.mxu0 0.0
        %367 = vmatprep.subr.mxu0 0.0
        %368 = vmatpush2.msra.mxu0 0.0
        %369 = vmatprep.subr.mxu0 0.0
        %370 = vmatpush2.msra.mxu0 0.0
        %371 = vmatprep.mubr.f32.mxu0 0.0
        %372 = vmatmul.mubr.f32.gmra.mxu0 %v300
        %v373 = vpop.f32.mrf.mxu0
        %v374 = vadd.f32 0.0, %v373
        %v375 = vpop.f32.mrf.mxu0
        %v376 = vadd.f32 0.0, %v375
        %377 = vdwg.mxu0
        %v379 = vcombine.high %v290, %v290
        %v381 = vsel %vm298, %v294, 0
        %v383 = vsel %vm302, %v290, 0
        %v385 = vsel %vm302, %v379, 0
        %387 = vmatprep.subr.mxu0 0.0
        %388 = vmatpush1.msra.mxu0 0.0
        %389 = vmatprep.subr.mxu0 0.0
        %390 = vmatpush1.msra.mxu0 0.0
        %391 = vmatprep.subr.mxu0 0.0
        %392 = vmatpush1.msra.mxu0 0.0
        %393 = vmatprep.subr.mxu0 0.0
        %394 = vmatpush1.msra.mxu0 0.0
        %395 = vmatprep.subr.mxu0 0.0
        %396 = vmatpush1.msra.mxu0 0.0
        %397 = vmatprep.subr.mxu0 0.0
        %398 = vmatpush1.msra.mxu0 0.0
        %399 = vmatprep.subr.mxu0 0.0
        %400 = vmatpush1.msra.mxu0 0.0
        %401 = vmatprep.subr.mxu0 0.0
        %402 = vmatpush1.msra.mxu0 0.0
        %403 = vmatprep.subr.mxu0 0.0
        %404 = vmatpush1.msra.mxu0 0.0
        %405 = vmatprep.subr.mxu0 0.0
        %406 = vmatpush1.msra.mxu0 0.0
        %407 = vmatprep.subr.mxu0 0.0
        %408 = vmatpush1.msra.mxu0 0.0
        %409 = vmatprep.subr.mxu0 0.0
        %410 = vmatpush1.msra.mxu0 0.0
        %411 = vmatprep.subr.mxu0 0.0
        %412 = vmatpush1.msra.mxu0 0.0
        %413 = vmatprep.subr.mxu0 0.0
        %414 = vmatpush1.msra.mxu0 0.0
        %415 = vmatprep.subr.mxu0 0.0
        %416 = vmatpush1.msra.mxu0 0.0
        %417 = vmatprep.subr.mxu0 %v385
        %418 = vmatpush1.msra.mxu0 %v383
        %419 = vmatprep.subr.mxu0 0.0
        %420 = vmatpush2.msra.mxu0 0.0
        %421 = vmatprep.subr.mxu0 0.0
        %422 = vmatpush2.msra.mxu0 0.0
        %423 = vmatprep.subr.mxu0 0.0
        %424 = vmatpush2.msra.mxu0 0.0
        %425 = vmatprep.subr.mxu0 0.0
        %426 = vmatpush2.msra.mxu0 0.0
        %427 = vmatprep.subr.mxu0 0.0
        %428 = vmatpush2.msra.mxu0 0.0
        %429 = vmatprep.subr.mxu0 0.0
        %430 = vmatpush2.msra.mxu0 0.0
        %431 = vmatprep.subr.mxu0 0.0
        %432 = vmatpush2.msra.mxu0 0.0
        %433 = vmatprep.subr.mxu0 0.0
        %434 = vmatpush2.msra.mxu0 0.0
        %435 = vmatprep.subr.mxu0 0.0
        %436 = vmatpush2.msra.mxu0 0.0
        %437 = vmatprep.subr.mxu0 0.0
        %438 = vmatpush2.msra.mxu0 0.0
        %439 = vmatprep.subr.mxu0 0.0
        %440 = vmatpush2.msra.mxu0 0.0
        %441 = vmatprep.subr.mxu0 0.0
        %442 = vmatpush2.msra.mxu0 0.0
        %443 = vmatprep.subr.mxu0 0.0
        %444 = vmatpush2.msra.mxu0 0.0
        %445 = vmatprep.subr.mxu0 0.0
        %446 = vmatpush2.msra.mxu0 0.0
        %447 = vmatprep.subr.mxu0 0.0
        %448 = vmatpush2.msra.mxu0 0.0
        %449 = vmatprep.subr.mxu0 0.0
        %450 = vmatpush2.msra.mxu0 0.0
        %451 = vmatprep.mubr.f32.mxu0 0.0
        %452 = vmatmul.mubr.f32.gmra.mxu0 %v381
        %v453 = vpop.f32.mrf.mxu0
        %v454 = vadd.f32 %v374, %v453
        %v455 = vpop.f32.mrf.mxu0
        %v456 = vadd.f32 %v376, %v455
        %457 = vdwg.mxu0
        %459 = vset.pattern.permute.xlu0 0
        %460 = vperm.xlu0 %459, %v292
        %v461 = vpop.permute.xlu0 %460
        %v463 = vadd.f32 %v454, %v461
        %v464 = vadd.f32 %v456, %v461
        %v465 = vmax.f32 %v463, 0.0
        %v466 = vmax.f32 %v464, 0.0
        %467 = vset.pattern.permute.xlu0 1
        %468 = vperm.xlu0 %467, %v292
        %v469 = vpop.permute.xlu0 %468
        %v471 = vmul.f32 %v465, %v469
        %v472 = vmul.f32 %v466, %v469
        %v473 = vrot.slane %v471, 4
        %v474 = vadd.f32 %v471, %v473
        %v475 = vrot.slane %v474, 2
        %v476 = vadd.f32 %v474, %v475
        %v477 = vrot.slane %v476, 1
        %v478 = vadd.f32 %v476, %v477
        %v479 = vrot.slane %v472, 4
        %v480 = vadd.f32 %v472, %v479
        %v481 = vrot.slane %v480, 2
        %v482 = vadd.f32 %v480, %v481
        %v483 = vrot.slane %v482, 1
        %v484 = vadd.f32 %v482, %v483
        %486 = vset.pattern.permute.xlu0 2
        %487 = vperm.xlu0 %486, %v293
        %v488 = vpop.permute.xlu0 %487
        %v490 = vadd.f32 %v478, %v488
        %v491 = vadd.f32 %v484, %v488
        %v492 = vxor.u32 %v490, 2147483648
        %v493 = vxor.u32 %v491, 2147483648
        %v494 = vmul.f32 %v492, 1.442695
        %v495 = vpow.pop %v494
        %v496 = vmul.f32 %v493, 1.442695
        %v497 = vpow.pop %v496
        %v498 = vadd.f32 %v495, 1.0
        %v499 = vadd.f32 %v497, 1.0
        %v500 = vrcp.pop %v498
        %v501 = vmul.f32 1.0, %v500
        %v502 = vrcp.pop %v499
        %v503 = vmul.f32 1.0, %v502
        %v504 = vlaneseq
        %v505 = vshrl.u32 %v504, 7
        %v506 = vsub.s32 0, %v505
        %v507 = vrot.slane %v501, %v506
        %v508 = vlaneseq
        %v509 = vshrl.u32 %v508, 7
        %v510 = vsub.s32 0, %v509
        %v511 = vrot.slane %v503, %v510
        %v514 = vcombine.low %v507, %v511
        %v516 = vmul.f32 %v291, %v514
        %517 = vst [vmem:[%s268] sm:$0xff] %v516
        %s518 = sand.u32 %s160, 1
        %s519 = scalar_lea.sflag [#allocation3], %s518
        %s520 = sand.u32 %s160, 1
        %s521 = smul.addr %s520, 8
        %s522 = scalar_lea.vmem [#allocation2], %s521
        // Predicated region
        $region41: #{tpu_custom_call.1} parent=39 // pred_check
          %p523 = pneg %p170
        $region42: #{tpu_custom_call.1} parent=39 // pred_check_branch
          %525 = sbr.rel (%p523) target = $region44
        $region43: #{tpu_custom_call.1} parent=39 // pred_region
          %s526 = smul.u32 2, %s24
          %s528 = ssub.s32 128, 128
          %529 = vsyncadd %s519, %s528
          %s530 = smul.addr %s23, 2
          %s531 = sadd.s32 %s526, %s530
          %s532 = smul.addr %s531, 64
          %s533 = scalar_lea.hbm %s5, %s532
          %s535 = sshll.u32 %s522, 4
          %s536 = int_to_ptr.vmem [resolvable:$true] %s535
          %538 = dma.vmem_to_hbm [thread:$0]  %s536, 128, %s533, %s519
        $region44: #{tpu_custom_call.1} parent=39 // pred_fallthru
          _
      $region40: #{tpu_custom_call.1} parent=5 // pred_fallthru
        _
      %p539 = scmp.le.s32.totalorder 2, %s14
      // Predicated region
      $region45: #{tpu_custom_call.1} parent=5 // pred_check
        %p540 = pneg %p539
      $region46: #{tpu_custom_call.1} parent=5 // pred_check_branch
        %542 = sbr.rel (%p540) target = $region48
      $region47: #{tpu_custom_call.1} parent=5 // pred_region
        %s543 = ssub.s32 %s14, 2
        // Predicated region
        $region49: #{tpu_custom_call.1} parent=47 // pred_check
          %p544 = pneg %p176
        $region50: #{tpu_custom_call.1} parent=47 // pred_check_branch
          %546 = sbr.rel (%p544) target = $region52
        $region51: #{tpu_custom_call.1} parent=47 // pred_region
          %s547 = sand.u32 %s161, 1
          %s548 = scalar_lea.sflag [#allocation3], %s547
          %s549 = sand.u32 %s161, 1
          %s550 = smul.addr %s549, 8
          %s551 = scalar_lea.vmem [#allocation2], %s550
          %552 = dma.done %s548, 128
        $region52: #{tpu_custom_call.1} parent=47 // pred_fallthru
          _
      $region48: #{tpu_custom_call.1} parent=5 // pred_fallthru
        _
    $region6: #{tpu_custom_call.1} parent=1 // loop_footer
      %s18 = sadd.s32 1, %s14
    $region7: #{tpu_custom_call.1} parent=1 // loop_footer_branch
      %13 = sbr.rel target = $region3
    $region8: #{tpu_custom_call.1} parent=1 // loop_exit
      _
    %553 = vsyncpa [#allocation3], 1
    %s554 = scalar_lea.sflag [#allocation3], 1
    %555 = vsyncpa %s554, 1

</llo_original>
